<compile_context>
chip_gen: v7x
topology: tpu7x:2x2x1
jax: 0.10.0
libtpu: 0.0.40
codegen_flags: <defaults>
</compile_context>

<pallas_src>
import jax
import jax.numpy as jnp
from jax.experimental import pallas as pl
from jax.experimental.pallas import tpu as pltpu

_SUBLANE_F32 = 8
_PROJ_HIDDEN = 512


def _round_up(x, m):
    return ((x + m - 1) // m) * m


def _projector_kernel(x_ref, w1_ref, b1_ref, w2_ref, b2_ref, out_ref, h_ref):
    # x arrives f32; cast to bf16 on the VPU (free slack) right before the
    # MXU.  Precision choice: bf16 operands, f32 accumulation.
    x_b = x_ref[...].astype(jnp.bfloat16)
    h = jnp.dot(x_b, w1_ref[...], preferred_element_type=jnp.float32)
    # Bias + ReLU in f32 on the VPU.
    h = jnp.maximum(h + b1_ref[...], 0.0)
    # Stage the (bm, 512) intermediate through VMEM scratch in bf16 (bounds
    # vreg pressure at large bm) and feed the second MXU pass.
    h_ref[...] = h.astype(jnp.bfloat16)
    out = jnp.dot(h_ref[...], w2_ref[...], preferred_element_type=jnp.float32)
    out_ref[...] = (out + b2_ref[...]).astype(out_ref.dtype)


def _vmem_capacity_bytes():
    try:
        cap = getattr(pltpu.get_tpu_info(), "vmem_capacity_bytes", None)
        if cap:
            return int(cap)
    except Exception:
        pass
    return 64 << 20  # conservative fallback: v7x has the smallest VMEM/TC


def _vmem_estimate_bytes(bm, f, h, p, out_itemsize):
    return (2 * bm * f * 4                                    # x tile (f32, double-buffered)
            + 2 * (f * h * 2 + h * 4 + h * p * 2 + p * 4)     # resident weights/biases
            + 2 * bm * p * out_itemsize                       # out tile (double-buffered)
            + bm * h * 2)                                     # h scratch (bf16)


def _choose_bm(b_in, bm_max=128):
    """Pick the batch tile.

    Multiple of 16 (packed sublanes for the bf16 intermediate), capped at
    bm_max=128 (fills the MXU M-stream; v5e-friendly) and at ceil(B/2) so
    batches above 64 rows always get >= 2 grid steps (v7x megacore sharding
    + pipeline overlap).  Among candidates, minimize grid steps first (each
    step costs ~0.35us), then pad waste, then prefer the larger tile.
    """
    b8 = _round_up(max(b_in, 1), _SUBLANE_F32)
    if b8 <= 64:
        return b8                                   # tiny batch: one step, no extra pad
    hi = min(bm_max, _round_up(-(-b8 // 2), 16))    # guarantees >= 2 grid steps
    best_bm, best_key = 16, None
    for bm in range(16, hi + 1, 16):
        b_pad = _round_up(b8, bm)
        key = (b_pad // bm, b_pad - b8, -bm)
        if best_key is None or key < best_key:
            best_bm, best_key = bm, key
    return best_bm


def projector_pallas(x, params, *, out_dtype=jnp.float32, bm_max=128):
    """Fused Linear(F->512) -> ReLU -> Linear(512->P) projector.

    x: [B, F] float32 features in their native layout (no host cast/pad of F).
    params: (w1 [F,512] bf16, b1 [1,512] f32, w2 [512,P] bf16, b2 [1,P] f32).
    Returns [B, P] in `out_dtype` (f32 default; bf16 is an opt-in that halves
    output HBM writeback on memory-bound chips).
    """
    w1, b1, w2, b2 = params
    b_in, f = x.shape
    h = w1.shape[1]
    p = w2.shape[1]

    bm = _choose_bm(b_in, bm_max)
    b_pad = _round_up(b_in, bm)
    xp = x if b_pad == b_in else jnp.pad(x, ((0, b_pad - b_in), (0, 0)))

    out_itemsize = jnp.dtype(out_dtype).itemsize
    vmem_bytes = _vmem_estimate_bytes(bm, f, h, p, out_itemsize)
    compiler_kwargs = {"dimension_semantics": ("parallel",)}
    if vmem_bytes > (12 << 20):  # within ~25% of v5e's 16 MiB default scoped limit
        compiler_kwargs["vmem_limit_bytes"] = min(
            vmem_bytes + (4 << 20), int(0.72 * _vmem_capacity_bytes()))

    cost = pl.CostEstimate(
        flops=2 * b_pad * (f * h + h * p),
        transcendentals=0,
        bytes_accessed=(xp.size * 4 + w1.size * 2 + b1.size * 4
                        + w2.size * 2 + b2.size * 4 + b_pad * p * out_itemsize),
    )

    out = pl.pallas_call(
        _projector_kernel,
        out_shape=jax.ShapeDtypeStruct((b_pad, p), out_dtype),
        grid_spec=pltpu.PrefetchScalarGridSpec(
            num_scalar_prefetch=0,
            grid=(b_pad // bm,),
            in_specs=[
                # x tile: f32, F kept at its native (full-dim) extent.
                pl.BlockSpec((bm, f), lambda i: (i, 0)),
                # Resident weights/biases: constant index_map -> fetched once.
                pl.BlockSpec((f, h), lambda i: (0, 0)),
                pl.BlockSpec((1, h), lambda i: (0, 0)),
                pl.BlockSpec((h, p), lambda i: (0, 0)),
                pl.BlockSpec((1, p), lambda i: (0, 0)),
            ],
            out_specs=pl.BlockSpec((bm, p), lambda i: (i, 0)),
            scratch_shapes=[pltpu.VMEM((bm, h), jnp.bfloat16)],
        ),
        compiler_params=pltpu.CompilerParams(**compiler_kwargs),
        cost_estimate=cost,
    )(xp, w1, b1, w2, b2)

    return out if b_pad == b_in else out[:b_in]


class EmbModelPallas:
    """JAX/Pallas equivalent of EmbModel (encoder == Identity on features)."""

    def __init__(self, feature_dim, projection_dim, key,
                 store_embeddings=False, num_train=0):
        self.feature_dim = feature_dim
        self.projection_dim = projection_dim
        self.proj_hidden = _PROJ_HIDDEN

        k1, k2, k3, k4 = jax.random.split(key, 4)
        # nn.Linear default init: U(-1/sqrt(fan_in), 1/sqrt(fan_in)).
        lim1 = 1.0 / jnp.sqrt(jnp.float32(feature_dim))
        lim2 = 1.0 / jnp.sqrt(jnp.float32(self.proj_hidden))
        self.w1 = jax.random.uniform(
            k1, (feature_dim, self.proj_hidden), jnp.float32, -lim1, lim1)
        self.b1 = jax.random.uniform(
            k2, (1, self.proj_hidden), jnp.float32, -lim1, lim1)
        self.w2 = jax.random.uniform(
            k3, (self.proj_hidden, projection_dim), jnp.float32, -lim2, lim2)
        self.b2 = jax.random.uniform(
            k4, (1, projection_dim), jnp.float32, -lim2, lim2)

        # Weights cast to bf16 ONCE (MXU operand precision); biases stay f32.
        # No shape padding needed: full-dim blocks handle unaligned F / P.
        self._params = (self.w1.astype(jnp.bfloat16), self.b1,
                        self.w2.astype(jnp.bfloat16), self.b2)

        if store_embeddings:
            self.emb_memory = jnp.zeros((num_train, projection_dim), jnp.float32)
        # TODO(synk): update_memory (momentum memory-bank update) is a
        #             training-side buffer op, not part of forward().

    def __call__(self, x, only_feats=False, context=None):
        op = {}
        op['feat'] = x  # base_encoder (fc=Identity) is external; see TODO above
        if not only_feats:
            op['emb'] = projector_pallas(x, self._params)
        return op


if __name__ == "__main__":
    key = jax.random.PRNGKey(0)
    k_param, k_x, k_x2 = jax.random.split(key, 3)

    # Small shapes exercising the unaligned paths:
    #   batch not a multiple of 8, F not a multiple of 128, P < 128.
    batch = 6
    feature_dim = 192       # enc.fc.in_features (small synthetic value)
    projection_dim = 96     # args['projection_dim']

    model = EmbModelPallas(feature_dim, projection_dim, k_param)
    x = jax.random.normal(k_x, (batch, feature_dim), jnp.float32)

    out = model(x)
    jax.block_until_ready(out['emb'])
    assert out['feat'].shape == (batch, feature_dim)
    assert out['emb'].shape == (batch, projection_dim)
    assert out['emb'].dtype == jnp.float32

    # Reference with matching numerics (bf16 operands, f32 accumulation).
    def ref_projector(xv):
        xb = xv.astype(jnp.bfloat16)
        w1b = model.w1.astype(jnp.bfloat16)
        w2b = model.w2.astype(jnp.bfloat16)
        hr = jnp.maximum(
            jnp.dot(xb, w1b, preferred_element_type=jnp.float32) + model.b1, 0.0)
        return jnp.dot(hr.astype(jnp.bfloat16), w2b,
                       preferred_element_type=jnp.float32) + model.b2

    assert jnp.allclose(out['emb'], ref_projector(x), atol=1e-2, rtol=1e-2)

    # Multi-step grid path: batch that is not a multiple of the chosen tile.
    x2 = jax.random.normal(k_x2, (200, feature_dim), jnp.float32)
    out2 = model(x2)
    jax.block_until_ready(out2['emb'])
    assert out2['emb'].shape == (200, projection_dim)
    assert jnp.allclose(out2['emb'], ref_projector(x2), atol=1e-2, rtol=1e-2)

    # only_feats path
    out3 = model(x, only_feats=True)
    assert 'emb' not in out3

    print("KERNEL_OK")
</pallas_src>

<mosaic_0001>
module attributes {stable_mosaic.version = 11 : i64} {
  func.func @_projector_kernel(%arg0: i32, %arg1: memref<8x192xf32, #tpu.memory_space<vmem>>, %arg2: memref<192x512xbf16, #tpu.memory_space<vmem>>, %arg3: memref<1x512xf32, #tpu.memory_space<vmem>>, %arg4: memref<512x96xbf16, #tpu.memory_space<vmem>>, %arg5: memref<1x96xf32, #tpu.memory_space<vmem>>, %arg6: memref<8x96xf32, #tpu.memory_space<vmem>>, %arg7: memref<8x512xbf16, #tpu.memory_space<vmem>>) attributes {dimension_semantics = [#tpu.dimension_semantics<parallel>], iteration_bounds = array<i64: 1>, scalar_prefetch = 0 : i64, scratch_operands = 1 : i64, tpu.core_type = #tpu.core_type<tc>, window_params = [{transform_indices = @transform_0, window_bounds = array<i64: 8, 192>}, {pipeline_mode = #tpu.pipeline_mode<synchronous>, transform_indices = @transform_1, window_bounds = array<i64: 192, 512>}, {pipeline_mode = #tpu.pipeline_mode<synchronous>, transform_indices = @transform_2, window_bounds = array<i64: 1, 512>}, {pipeline_mode = #tpu.pipeline_mode<synchronous>, transform_indices = @transform_3, window_bounds = array<i64: 512, 96>}, {pipeline_mode = #tpu.pipeline_mode<synchronous>, transform_indices = @transform_4, window_bounds = array<i64: 1, 96>}, {transform_indices = @transform_5, window_bounds = array<i64: 8, 96>}]} {
    %c0 = arith.constant 0 : index
    %c0_0 = arith.constant 0 : index
    %0 = vector.load %arg1[%c0, %c0_0] : memref<8x192xf32, #tpu.memory_space<vmem>>, vector<8x192xf32>
    %1 = arith.truncf %0 : vector<8x192xf32> to vector<8x192xbf16>
    %c0_1 = arith.constant 0 : index
    %c0_2 = arith.constant 0 : index
    %2 = vector.load %arg2[%c0_1, %c0_2] : memref<192x512xbf16, #tpu.memory_space<vmem>>, vector<192x512xbf16>
    %cst = arith.constant dense<0.000000e+00> : vector<8x512xf32>
    %3 = tpu.matmul %1, %2, %cst {dimension_numbers = #tpu.dot_dimension_numbers<[1], [0], [0], [1], [0, 0, 1, 1], [], []>} : vector<8x192xbf16>, vector<192x512xbf16>, vector<8x512xf32> -> vector<8x512xf32>
    %c0_3 = arith.constant 0 : index
    %c0_4 = arith.constant 0 : index
    %4 = vector.load %arg3[%c0_3, %c0_4] : memref<1x512xf32, #tpu.memory_space<vmem>>, vector<1x512xf32>
    %5 = vector.broadcast %4 : vector<1x512xf32> to vector<8x512xf32>
    %6 = arith.addf %3, %5 : vector<8x512xf32>
    %cst_5 = arith.constant 0.000000e+00 : f32
    %7 = vector.broadcast %cst_5 : f32 to vector<8x512xf32>
    %8 = arith.maximumf %6, %7 : vector<8x512xf32>
    %9 = arith.truncf %8 : vector<8x512xf32> to vector<8x512xbf16>
    %c0_6 = arith.constant 0 : index
    %c0_7 = arith.constant 0 : index
    %10 = vector.load %arg7[%c0_6, %c0_7] : memref<8x512xbf16, #tpu.memory_space<vmem>>, vector<8x512xbf16>
    tpu.vector_store %arg7[%c0_6, %c0_7], %9 {strides = array<i32>} : memref<8x512xbf16, #tpu.memory_space<vmem>>, vector<8x512xbf16>,
    %c0_8 = arith.constant 0 : index
    %c0_9 = arith.constant 0 : index
    %11 = vector.load %arg7[%c0_8, %c0_9] : memref<8x512xbf16, #tpu.memory_space<vmem>>, vector<8x512xbf16>
    %c0_10 = arith.constant 0 : index
    %c0_11 = arith.constant 0 : index
    %12 = vector.load %arg4[%c0_10, %c0_11] : memref<512x96xbf16, #tpu.memory_space<vmem>>, vector<512x96xbf16>
    %cst_12 = arith.constant dense<0.000000e+00> : vector<8x96xf32>
    %13 = tpu.matmul %11, %12, %cst_12 {dimension_numbers = #tpu.dot_dimension_numbers<[1], [0], [0], [1], [0, 0, 1, 1], [], []>} : vector<8x512xbf16>, vector<512x96xbf16>, vector<8x96xf32> -> vector<8x96xf32>
    %c0_13 = arith.constant 0 : index
    %c0_14 = arith.constant 0 : index
    %14 = vector.load %arg5[%c0_13, %c0_14] : memref<1x96xf32, #tpu.memory_space<vmem>>, vector<1x96xf32>
    %15 = vector.broadcast %14 : vector<1x96xf32> to vector<8x96xf32>
    %16 = arith.addf %13, %15 : vector<8x96xf32>
    %c0_15 = arith.constant 0 : index
    %c0_16 = arith.constant 0 : index
    %17 = vector.load %arg6[%c0_15, %c0_16] : memref<8x96xf32, #tpu.memory_space<vmem>>, vector<8x96xf32>
    tpu.vector_store %arg6[%c0_15, %c0_16], %16 {strides = array<i32>} : memref<8x96xf32, #tpu.memory_space<vmem>>, vector<8x96xf32>,
    return
  }
  func.func @transform_0(%arg0: i32) -> (i32, i32) {
    %c0_i32 = arith.constant 0 : i32
    %c0_i32_0 = arith.constant 0 : i32
    return %arg0, %c0_i32 : i32, i32
  }
  func.func @transform_1(%arg0: i32) -> (i32, i32) {
    %c0_i32 = arith.constant 0 : i32
    %c0_i32_0 = arith.constant 0 : i32
    %c0_i32_1 = arith.constant 0 : i32
    return %c0_i32, %c0_i32_0 : i32, i32
  }
  func.func @transform_2(%arg0: i32) -> (i32, i32) {
    %c0_i32 = arith.constant 0 : i32
    %c0_i32_0 = arith.constant 0 : i32
    %c0_i32_1 = arith.constant 0 : i32
    return %c0_i32, %c0_i32_0 : i32, i32
  }
  func.func @transform_3(%arg0: i32) -> (i32, i32) {
    %c0_i32 = arith.constant 0 : i32
    %c0_i32_0 = arith.constant 0 : i32
    %c0_i32_1 = arith.constant 0 : i32
    return %c0_i32, %c0_i32_0 : i32, i32
  }
  func.func @transform_4(%arg0: i32) -> (i32, i32) {
    %c0_i32 = arith.constant 0 : i32
    %c0_i32_0 = arith.constant 0 : i32
    %c0_i32_1 = arith.constant 0 : i32
    return %c0_i32, %c0_i32_0 : i32, i32
  }
  func.func @transform_5(%arg0: i32) -> (i32, i32) {
    %c0_i32 = arith.constant 0 : i32
    %c0_i32_0 = arith.constant 0 : i32
    return %arg0, %c0_i32 : i32, i32
  }
}

</mosaic_0001>

<llo_original>
// kernel: tpu_custom_call.1
$region0: #{tpu_custom_call.1}
  #allocation0 [shape = 'u32[]', space=smem, size = 0x4, offset = 0x4, fixed_abs, tag = 'smem constant byte address 0x4 - core index']
  #allocation1 [shape = 'u32[144,128]{1,0:T(1,128)}', space=vmem, size = 0x12000, scoped, tag = 'internal scratch']
  #allocation2 [shape = 'bf16[8,512]{1,0:T(8,128)(2,1)}', space=vmem, size = 0x2000, scoped, tag = 'scratch operand']
  %s0 = inlined_call_operand.vmem [shape: f32[8,192], index: 0, kind: input, shape index: {}]
  %s1 = inlined_call_operand.vmem [shape: bf16[192,512], index: 1, kind: input, shape index: {}]
  %s2 = inlined_call_operand.vmem [shape: f32[1,512], index: 2, kind: input, shape index: {}]
  %s3 = inlined_call_operand.vmem [shape: bf16[512,96], index: 3, kind: input, shape index: {}]
  %s4 = inlined_call_operand.vmem [shape: f32[1,96], index: 4, kind: input, shape index: {}]
  %s5 = inlined_call_operand.hbm [shape: f32[8,96], index: 5, kind: output, shape index: {}]
  %s6 = sld [smem:[#allocation0]]
  $region30: #{tpu_custom_call.1} parent=0
    _
  %s8 = ssub.s32 1, %s6
  %s9 = scalar_select 0, %s8, %s6
  $region1: #{tpu_custom_call.1} parent=0
    #allocation3 [shape = 'u8[4096]{0}', space=vmem, size = 0x1000, scoped, tag = 'output window, operand 0, single buffered']
    #allocation4 [shape = 's32[1]{0}', space=sflag, size = 0x4, scoped, tag = 'scoped memory for tpu_custom_call.1']
    %10 = vsyncpa [#allocation4], 0
    // Predicated region
    $region2: #{tpu_custom_call.1} parent=1 // pred_check
      _
    $region3: #{tpu_custom_call.1} parent=1 // pred_check_branch
      %12 = sbr.rel (0) target = $region5
    $region4: #{tpu_custom_call.1} parent=1 // pred_region
      _
    $region5: #{tpu_custom_call.1} parent=1 // pred_fallthru
      _
    // Predicated region
    $region6: #{tpu_custom_call.1} parent=1 // pred_check
      _
    $region7: #{tpu_custom_call.1} parent=1 // pred_check_branch
      %14 = sbr.rel (0) target = $region9
    $region8: #{tpu_custom_call.1} parent=1 // pred_region
      _
    $region9: #{tpu_custom_call.1} parent=1 // pred_fallthru
      _
    // Predicated region
    $region10: #{tpu_custom_call.1} parent=1 // pred_check
      _
    $region11: #{tpu_custom_call.1} parent=1 // pred_check_branch
      %16 = sbr.rel (0) target = $region13
    $region12: #{tpu_custom_call.1} parent=1 // pred_region
      _
    $region13: #{tpu_custom_call.1} parent=1 // pred_fallthru
      _
    // Predicated region
    $region14: #{tpu_custom_call.1} parent=1 // pred_check
      _
    $region15: #{tpu_custom_call.1} parent=1 // pred_check_branch
      %18 = sbr.rel (0) target = $region17
    $region16: #{tpu_custom_call.1} parent=1 // pred_region
      _
    $region17: #{tpu_custom_call.1} parent=1 // pred_fallthru
      _
    // Predicated region
    $region18: #{tpu_custom_call.1} parent=1 // pred_check
      _
    $region19: #{tpu_custom_call.1} parent=1 // pred_check_branch
      %20 = sbr.rel (0) target = $region21
    $region20: #{tpu_custom_call.1} parent=1 // pred_region
      _
    $region21: #{tpu_custom_call.1} parent=1 // pred_fallthru
      _
    %v22 = vld [vmem:[%s0] sm:$0xff]
    %v23 = vld [vmem:[%s0 + $0x8] sm:$0xff]
    %v24 = vpack.c.bf16 %v22, %v22
    %v25 = vpack.c.bf16 %v23, %v23
    %v26 = vld [vmem:[%s1] sm:$0xff]
    %v27 = vld [vmem:[%s1 + $0x8] sm:$0xff]
    %v28 = vld [vmem:[%s1 + $0x10] sm:$0xff]
    %v29 = vld [vmem:[%s1 + $0x18] sm:$0xff]
    %v30 = vld [vmem:[%s1 + $0x20] sm:$0xff]
    %v31 = vld [vmem:[%s1 + $0x28] sm:$0xff]
    %v32 = vld [vmem:[%s1 + $0x30] sm:$0xff]
    %v33 = vld [vmem:[%s1 + $0x38] sm:$0xff]
    %v34 = vld [vmem:[%s1 + $0x40] sm:$0xff]
    %v35 = vld [vmem:[%s1 + $0x48] sm:$0xff]
    %v36 = vld [vmem:[%s1 + $0x50] sm:$0xff]
    %v37 = vld [vmem:[%s1 + $0x58] sm:$0xff]
    %v38 = vld [vmem:[%s1 + $0x60] sm:$0xff]
    %v39 = vld [vmem:[%s1 + $0x68] sm:$0xff]
    %v40 = vld [vmem:[%s1 + $0x70] sm:$0xff]
    %v41 = vld [vmem:[%s1 + $0x78] sm:$0xff]
    %v42 = vld [vmem:[%s1 + $0x80] sm:$0xff]
    %v43 = vld [vmem:[%s1 + $0x88] sm:$0xff]
    %v44 = vld [vmem:[%s1 + $0x90] sm:$0xff]
    %v45 = vld [vmem:[%s1 + $0x98] sm:$0xff]
    %v46 = vld [vmem:[%s1 + $0xa0] sm:$0xff]
    %v47 = vld [vmem:[%s1 + $0xa8] sm:$0xff]
    %v48 = vld [vmem:[%s1 + $0xb0] sm:$0xff]
    %v49 = vld [vmem:[%s1 + $0xb8] sm:$0xff]
    %v50 = vld [vmem:[%s1 + $0xc0] sm:$0xff]
    %v51 = vld [vmem:[%s1 + $0xc8] sm:$0xff]
    %v52 = vld [vmem:[%s1 + $0xd0] sm:$0xff]
    %v53 = vld [vmem:[%s1 + $0xd8] sm:$0xff]
    %v54 = vld [vmem:[%s1 + $0xe0] sm:$0xff]
    %v55 = vld [vmem:[%s1 + $0xe8] sm:$0xff]
    %v56 = vld [vmem:[%s1 + $0xf0] sm:$0xff]
    %v57 = vld [vmem:[%s1 + $0xf8] sm:$0xff]
    %v58 = vld [vmem:[%s1 + $0x100] sm:$0xff]
    %v59 = vld [vmem:[%s1 + $0x108] sm:$0xff]
    %v60 = vld [vmem:[%s1 + $0x110] sm:$0xff]
    %v61 = vld [vmem:[%s1 + $0x118] sm:$0xff]
    %v62 = vld [vmem:[%s1 + $0x120] sm:$0xff]
    %v63 = vld [vmem:[%s1 + $0x128] sm:$0xff]
    %v64 = vld [vmem:[%s1 + $0x130] sm:$0xff]
    %v65 = vld [vmem:[%s1 + $0x138] sm:$0xff]
    %v66 = vld [vmem:[%s1 + $0x140] sm:$0xff]
    %v67 = vld [vmem:[%s1 + $0x148] sm:$0xff]
    %v68 = vld [vmem:[%s1 + $0x150] sm:$0xff]
    %v69 = vld [vmem:[%s1 + $0x158] sm:$0xff]
    %v70 = vld [vmem:[%s1 + $0x160] sm:$0xff]
    %v71 = vld [vmem:[%s1 + $0x168] sm:$0xff]
    %v72 = vld [vmem:[%s1 + $0x170] sm:$0xff]
    %v73 = vld [vmem:[%s1 + $0x178] sm:$0xff]
    %v74 = vld [vmem:[%s2] sm:$0xf]
    %v76 = vlaneseq
    %v77 = vshrl.u32 %v76, 7
    %v78 = vsub.s32 0, %v77
    %v79 = vrot.slane %v74, %v78
    %v80 = vlaneseq
    %v81 = vshrl.u32 %v80, 7
    %v82 = vsub.s32 1, %v81
    %v83 = vrot.slane %v74, %v82
    %v84 = vlaneseq
    %v85 = vshrl.u32 %v84, 7
    %v86 = vsub.s32 2, %v85
    %v87 = vrot.slane %v74, %v86
    %v88 = vlaneseq
    %v89 = vshrl.u32 %v88, 7
    %v90 = vsub.s32 3, %v89
    %v91 = vrot.slane %v74, %v90
    %v144 = vunpack.c.l.b16 %v26
    %v145 = vunpack.c.h.b16 %v26
    %v146 = vunpack.c.l.b16 %v27
    %v147 = vunpack.c.h.b16 %v27
    %v148 = vunpack.c.l.b16 %v28
    %v149 = vunpack.c.h.b16 %v28
    %v150 = vunpack.c.l.b16 %v29
    %v151 = vunpack.c.h.b16 %v29
    %v152 = vunpack.c.l.b16 %v30
    %v153 = vunpack.c.h.b16 %v30
    %v154 = vunpack.c.l.b16 %v31
    %v155 = vunpack.c.h.b16 %v31
    %v156 = vunpack.c.l.b16 %v32
    %v157 = vunpack.c.h.b16 %v32
    %v158 = vunpack.c.l.b16 %v33
    %v159 = vunpack.c.h.b16 %v33
    %v160 = vunpack.c.l.b16 %v34
    %v161 = vunpack.c.h.b16 %v34
    %v162 = vunpack.c.l.b16 %v35
    %v163 = vunpack.c.h.b16 %v35
    %v164 = vunpack.c.l.b16 %v36
    %v165 = vunpack.c.h.b16 %v36
    %v166 = vunpack.c.l.b16 %v37
    %v167 = vunpack.c.h.b16 %v37
    %v168 = vunpack.c.l.b16 %v38
    %v169 = vunpack.c.h.b16 %v38
    %v170 = vunpack.c.l.b16 %v39
    %v171 = vunpack.c.h.b16 %v39
    %v172 = vunpack.c.l.b16 %v40
    %v173 = vunpack.c.h.b16 %v40
    %v174 = vunpack.c.l.b16 %v41
    %v175 = vunpack.c.h.b16 %v41
    %v176 = vunpack.c.l.b16 %v42
    %v177 = vunpack.c.h.b16 %v42
    %v178 = vunpack.c.l.b16 %v43
    %v179 = vunpack.c.h.b16 %v43
    %v180 = vunpack.c.l.b16 %v44
    %v181 = vunpack.c.h.b16 %v44
    %v182 = vunpack.c.l.b16 %v45
    %v183 = vunpack.c.h.b16 %v45
    %v184 = vunpack.c.l.b16 %v46
    %v185 = vunpack.c.h.b16 %v46
    %v186 = vunpack.c.l.b16 %v47
    %v187 = vunpack.c.h.b16 %v47
    %v188 = vunpack.c.l.b16 %v48
    %v189 = vunpack.c.h.b16 %v48
    %v190 = vunpack.c.l.b16 %v49
    %v191 = vunpack.c.h.b16 %v49
    %v192 = vunpack.c.l.b16 %v50
    %v193 = vunpack.c.h.b16 %v50
    %v194 = vunpack.c.l.b16 %v51
    %v195 = vunpack.c.h.b16 %v51
    %v196 = vunpack.c.l.b16 %v52
    %v197 = vunpack.c.h.b16 %v52
    %v198 = vunpack.c.l.b16 %v53
    %v199 = vunpack.c.h.b16 %v53
    %v200 = vunpack.c.l.b16 %v54
    %v201 = vunpack.c.h.b16 %v54
    %v202 = vunpack.c.l.b16 %v55
    %v203 = vunpack.c.h.b16 %v55
    %v204 = vunpack.c.l.b16 %v56
    %v205 = vunpack.c.h.b16 %v56
    %v206 = vunpack.c.l.b16 %v57
    %v207 = vunpack.c.h.b16 %v57
    %v208 = vunpack.c.l.b16 %v58
    %v209 = vunpack.c.h.b16 %v58
    %v210 = vunpack.c.l.b16 %v59
    %v211 = vunpack.c.h.b16 %v59
    %v212 = vunpack.c.l.b16 %v60
    %v213 = vunpack.c.h.b16 %v60
    %v214 = vunpack.c.l.b16 %v61
    %v215 = vunpack.c.h.b16 %v61
    %v216 = vunpack.c.l.b16 %v62
    %v217 = vunpack.c.h.b16 %v62
    %v218 = vunpack.c.l.b16 %v63
    %v219 = vunpack.c.h.b16 %v63
    %v220 = vunpack.c.l.b16 %v64
    %v221 = vunpack.c.h.b16 %v64
    %v222 = vunpack.c.l.b16 %v65
    %v223 = vunpack.c.h.b16 %v65
    %v224 = vunpack.c.l.b16 %v66
    %v225 = vunpack.c.h.b16 %v66
    %v226 = vunpack.c.l.b16 %v67
    %v227 = vunpack.c.h.b16 %v67
    %v228 = vunpack.c.l.b16 %v68
    %v229 = vunpack.c.h.b16 %v68
    %v230 = vunpack.c.l.b16 %v69
    %v231 = vunpack.c.h.b16 %v69
    %v232 = vunpack.c.l.b16 %v70
    %v233 = vunpack.c.h.b16 %v70
    %v234 = vunpack.c.l.b16 %v71
    %v235 = vunpack.c.h.b16 %v71
    %v236 = vunpack.c.l.b16 %v72
    %v237 = vunpack.c.h.b16 %v72
    %v238 = vunpack.c.l.b16 %v73
    %v239 = vunpack.c.h.b16 %v73
    %v240 = vpack.c.b16 %v148, %v144
    %v241 = vpack.c.b16 %v149, %v145
    %v242 = vpack.c.b16 %v150, %v146
    %v243 = vpack.c.b16 %v151, %v147
    %v244 = vpack.c.b16 %v156, %v152
    %v245 = vpack.c.b16 %v157, %v153
    %v246 = vpack.c.b16 %v158, %v154
    %v247 = vpack.c.b16 %v159, %v155
    %v248 = vpack.c.b16 %v164, %v160
    %v249 = vpack.c.b16 %v165, %v161
    %v250 = vpack.c.b16 %v166, %v162
    %v251 = vpack.c.b16 %v167, %v163
    %v252 = vpack.c.b16 %v172, %v168
    %v253 = vpack.c.b16 %v173, %v169
    %v254 = vpack.c.b16 %v174, %v170
    %v255 = vpack.c.b16 %v175, %v171
    %v256 = vpack.c.b16 %v180, %v176
    %v257 = vpack.c.b16 %v181, %v177
    %v258 = vpack.c.b16 %v182, %v178
    %v259 = vpack.c.b16 %v183, %v179
    %v260 = vpack.c.b16 %v188, %v184
    %v261 = vpack.c.b16 %v189, %v185
    %v262 = vpack.c.b16 %v190, %v186
    %v263 = vpack.c.b16 %v191, %v187
    %v264 = vpack.c.b16 %v196, %v192
    %v265 = vpack.c.b16 %v197, %v193
    %v266 = vpack.c.b16 %v198, %v194
    %v267 = vpack.c.b16 %v199, %v195
    %v268 = vpack.c.b16 %v204, %v200
    %v269 = vpack.c.b16 %v205, %v201
    %v270 = vpack.c.b16 %v206, %v202
    %v271 = vpack.c.b16 %v207, %v203
    %v272 = vpack.c.b16 %v212, %v208
    %v273 = vpack.c.b16 %v213, %v209
    %v274 = vpack.c.b16 %v214, %v210
    %v275 = vpack.c.b16 %v215, %v211
    %v276 = vpack.c.b16 %v220, %v216
    %v277 = vpack.c.b16 %v221, %v217
    %v278 = vpack.c.b16 %v222, %v218
    %v279 = vpack.c.b16 %v223, %v219
    %v280 = vpack.c.b16 %v228, %v224
    %v281 = vpack.c.b16 %v229, %v225
    %v282 = vpack.c.b16 %v230, %v226
    %v283 = vpack.c.b16 %v231, %v227
    %v284 = vpack.c.b16 %v236, %v232
    %v285 = vpack.c.b16 %v237, %v233
    %v286 = vpack.c.b16 %v238, %v234
    %v287 = vpack.c.b16 %v239, %v235
    %vm336 = vcmask 523264
    %v338 = vsel %vm336, %v25, 0
    %340 = vmatprep.subr.bf16.mxu0 %v241
    %341 = vmatpush1.bf16.msra.mxu0 %v240
    %342 = vmatprep.subr.bf16.mxu0 %v245
    %343 = vmatpush1.bf16.msra.mxu0 %v244
    %344 = vmatprep.subr.bf16.mxu0 %v249
    %345 = vmatpush1.bf16.msra.mxu0 %v248
    %346 = vmatprep.subr.bf16.mxu0 %v253
    %347 = vmatpush1.bf16.msra.mxu0 %v252
    %348 = vmatprep.subr.bf16.mxu0 %v257
    %349 = vmatpush1.bf16.msra.mxu0 %v256
    %350 = vmatprep.subr.bf16.mxu0 %v261
    %351 = vmatpush1.bf16.msra.mxu0 %v260
    %352 = vmatprep.subr.bf16.mxu0 %v265
    %353 = vmatpush1.bf16.msra.mxu0 %v264
    %354 = vmatprep.subr.bf16.mxu0 %v269
    %355 = vmatpush1.bf16.msra.mxu0 %v268
    %356 = vmatprep.subr.bf16.mxu0 %v273
    %357 = vmatpush1.bf16.msra.mxu0 %v272
    %358 = vmatprep.subr.bf16.mxu0 %v277
    %359 = vmatpush1.bf16.msra.mxu0 %v276
    %360 = vmatprep.subr.bf16.mxu0 %v281
    %361 = vmatpush1.bf16.msra.mxu0 %v280
    %362 = vmatprep.subr.bf16.mxu0 %v285
    %363 = vmatpush1.bf16.msra.mxu0 %v284
    %364 = vmatprep.subr.bf16.mxu0 0
    %365 = vmatpush1.bf16.msra.mxu0 0
    %366 = vmatprep.subr.bf16.mxu0 0
    %367 = vmatpush1.bf16.msra.mxu0 0
    %368 = vmatprep.subr.bf16.mxu0 0
    %369 = vmatpush1.bf16.msra.mxu0 0
    %370 = vmatprep.subr.bf16.mxu0 0
    %371 = vmatpush1.bf16.msra.mxu0 0
    %372 = vmatprep.mubr.bf16.mxu0 %v338
    %373 = vmatmul.mubr.bf16.gmra.mrb[0].mxu0 %v24
    %v374 = vpop.f32.mrb[0].mxu0
    %v375 = vadd.f32 %v79, %v374
    %v376 = vpop.f32.mrb[0].mxu0
    %v377 = vadd.f32 %v83, %v376
    %v378 = vpop.f32.mrb[0].mxu0
    %v379 = vpop.f32.mrb[0].mxu0
    %380 = vdwg.mxu0
    %381 = vmatprep.subr.bf16.mxu0 %v243
    %382 = vmatpush1.bf16.msra.mxu0 %v242
    %383 = vmatprep.subr.bf16.mxu0 %v247
    %384 = vmatpush1.bf16.msra.mxu0 %v246
    %385 = vmatprep.subr.bf16.mxu0 %v251
    %386 = vmatpush1.bf16.msra.mxu0 %v250
    %387 = vmatprep.subr.bf16.mxu0 %v255
    %388 = vmatpush1.bf16.msra.mxu0 %v254
    %389 = vmatprep.subr.bf16.mxu0 %v259
    %390 = vmatpush1.bf16.msra.mxu0 %v258
    %391 = vmatprep.subr.bf16.mxu0 %v263
    %392 = vmatpush1.bf16.msra.mxu0 %v262
    %393 = vmatprep.subr.bf16.mxu0 %v267
    %394 = vmatpush1.bf16.msra.mxu0 %v266
    %395 = vmatprep.subr.bf16.mxu0 %v271
    %396 = vmatpush1.bf16.msra.mxu0 %v270
    %397 = vmatprep.subr.bf16.mxu0 %v275
    %398 = vmatpush1.bf16.msra.mxu0 %v274
    %399 = vmatprep.subr.bf16.mxu0 %v279
    %400 = vmatpush1.bf16.msra.mxu0 %v278
    %401 = vmatprep.subr.bf16.mxu0 %v283
    %402 = vmatpush1.bf16.msra.mxu0 %v282
    %403 = vmatprep.subr.bf16.mxu0 %v287
    %404 = vmatpush1.bf16.msra.mxu0 %v286
    %405 = vmatprep.subr.bf16.mxu0 0
    %406 = vmatpush1.bf16.msra.mxu0 0
    %407 = vmatprep.subr.bf16.mxu0 0
    %408 = vmatpush1.bf16.msra.mxu0 0
    %409 = vmatprep.subr.bf16.mxu0 0
    %410 = vmatpush1.bf16.msra.mxu0 0
    %411 = vmatprep.subr.bf16.mxu0 0
    %412 = vmatpush1.bf16.msra.mxu0 0
    %413 = vmatprep.mubr.bf16.mxu0 %v338
    %414 = vmatmul.mubr.bf16.gmra.mrb[0].mxu0 %v24
    %v415 = vpop.f32.mrb[0].mxu0
    %v416 = vadd.f32 %v87, %v415
    %v417 = vpop.f32.mrb[0].mxu0
    %v418 = vadd.f32 %v91, %v417
    %v419 = vpop.f32.mrb[0].mxu0
    %v420 = vpop.f32.mrb[0].mxu0
    %421 = vdwg.mxu0
    %v422 = vmax.f32 %v375, 0.0
    %v423 = vmax.f32 %v377, 0.0
    %v424 = vmax.f32 %v416, 0.0
    %v425 = vmax.f32 %v418, 0.0
    %v426 = vpack.c.bf16 %v422, %v422
    %v427 = vpack.c.bf16 %v423, %v423
    %v428 = vpack.c.bf16 %v424, %v424
    %v429 = vpack.c.bf16 %v425, %v425
    %v434 = vunpack.c.l.b16 %v426
    %v435 = vunpack.c.l.b16 %v427
    %v436 = vunpack.c.l.b16 %v428
    %v437 = vunpack.c.l.b16 %v429
    %v438 = vpack.c.b16 %v435, %v434
    %v439 = vpack.c.b16 %v437, %v436
    %442 = vst [vmem:[#allocation2] sm:$0xff] %v438
    %443 = vst [vmem:[#allocation2 + $0x8] sm:$0xff] %v439
    %v444 = vld [vmem:[#allocation2] sm:$0xff]
    %v445 = vld [vmem:[#allocation2 + $0x8] sm:$0xff]
    %v446 = vld [vmem:[%s3] sm:$0xf]
    %v447 = vld [vmem:[%s3 + $0x4] sm:$0xf]
    %v448 = vld [vmem:[%s3 + $0x8] sm:$0xf]
    %v449 = vld [vmem:[%s3 + $0xc] sm:$0xf]
    %v450 = vld [vmem:[%s3 + $0x10] sm:$0xf]
    %v451 = vld [vmem:[%s3 + $0x14] sm:$0xf]
    %v452 = vld [vmem:[%s3 + $0x18] sm:$0xf]
    %v453 = vld [vmem:[%s3 + $0x1c] sm:$0xf]
    %v454 = vld [vmem:[%s3 + $0x20] sm:$0xf]
    %v455 = vld [vmem:[%s3 + $0x24] sm:$0xf]
    %v456 = vld [vmem:[%s3 + $0x28] sm:$0xf]
    %v457 = vld [vmem:[%s3 + $0x2c] sm:$0xf]
    %v458 = vld [vmem:[%s3 + $0x30] sm:$0xf]
    %v459 = vld [vmem:[%s3 + $0x34] sm:$0xf]
    %v460 = vld [vmem:[%s3 + $0x38] sm:$0xf]
    %v461 = vld [vmem:[%s3 + $0x3c] sm:$0xf]
    %v462 = vld [vmem:[%s3 + $0x40] sm:$0xf]
    %v463 = vld [vmem:[%s3 + $0x44] sm:$0xf]
    %v464 = vld [vmem:[%s3 + $0x48] sm:$0xf]
    %v465 = vld [vmem:[%s3 + $0x4c] sm:$0xf]
    %v466 = vld [vmem:[%s3 + $0x50] sm:$0xf]
    %v467 = vld [vmem:[%s3 + $0x54] sm:$0xf]
    %v468 = vld [vmem:[%s3 + $0x58] sm:$0xf]
    %v469 = vld [vmem:[%s3 + $0x5c] sm:$0xf]
    %v470 = vld [vmem:[%s3 + $0x60] sm:$0xf]
    %v471 = vld [vmem:[%s3 + $0x64] sm:$0xf]
    %v472 = vld [vmem:[%s3 + $0x68] sm:$0xf]
    %v473 = vld [vmem:[%s3 + $0x6c] sm:$0xf]
    %v474 = vld [vmem:[%s3 + $0x70] sm:$0xf]
    %v475 = vld [vmem:[%s3 + $0x74] sm:$0xf]
    %v476 = vld [vmem:[%s3 + $0x78] sm:$0xf]
    %v477 = vld [vmem:[%s3 + $0x7c] sm:$0xf]
    %v478 = vld [vmem:[%s3 + $0x80] sm:$0xf]
    %v479 = vld [vmem:[%s3 + $0x84] sm:$0xf]
    %v480 = vld [vmem:[%s3 + $0x88] sm:$0xf]
    %v481 = vld [vmem:[%s3 + $0x8c] sm:$0xf]
    %v482 = vld [vmem:[%s3 + $0x90] sm:$0xf]
    %v483 = vld [vmem:[%s3 + $0x94] sm:$0xf]
    %v484 = vld [vmem:[%s3 + $0x98] sm:$0xf]
    %v485 = vld [vmem:[%s3 + $0x9c] sm:$0xf]
    %v486 = vld [vmem:[%s3 + $0xa0] sm:$0xf]
    %v487 = vld [vmem:[%s3 + $0xa4] sm:$0xf]
    %v488 = vld [vmem:[%s3 + $0xa8] sm:$0xf]
    %v489 = vld [vmem:[%s3 + $0xac] sm:$0xf]
    %v490 = vld [vmem:[%s3 + $0xb0] sm:$0xf]
    %v491 = vld [vmem:[%s3 + $0xb4] sm:$0xf]
    %v492 = vld [vmem:[%s3 + $0xb8] sm:$0xf]
    %v493 = vld [vmem:[%s3 + $0xbc] sm:$0xf]
    %v494 = vld [vmem:[%s3 + $0xc0] sm:$0xf]
    %v495 = vld [vmem:[%s3 + $0xc4] sm:$0xf]
    %v496 = vld [vmem:[%s3 + $0xc8] sm:$0xf]
    %v497 = vld [vmem:[%s3 + $0xcc] sm:$0xf]
    %v498 = vld [vmem:[%s3 + $0xd0] sm:$0xf]
    %v499 = vld [vmem:[%s3 + $0xd4] sm:$0xf]
    %v500 = vld [vmem:[%s3 + $0xd8] sm:$0xf]
    %v501 = vld [vmem:[%s3 + $0xdc] sm:$0xf]
    %v502 = vld [vmem:[%s3 + $0xe0] sm:$0xf]
    %v503 = vld [vmem:[%s3 + $0xe4] sm:$0xf]
    %v504 = vld [vmem:[%s3 + $0xe8] sm:$0xf]
    %v505 = vld [vmem:[%s3 + $0xec] sm:$0xf]
    %v506 = vld [vmem:[%s3 + $0xf0] sm:$0xf]
    %v507 = vld [vmem:[%s3 + $0xf4] sm:$0xf]
    %v508 = vld [vmem:[%s3 + $0xf8] sm:$0xf]
    %v509 = vld [vmem:[%s3 + $0xfc] sm:$0xf]
    %v510 = vld [vmem:[%s4] sm:$0x1]
    %v512 = vlaneseq
    %v513 = vshrl.u32 %v512, 7
    %v514 = vsub.s32 0, %v513
    %v515 = vrot.slane %v510, %v514
    %v519 = vunpack.c.l.b16 %v444
    %v520 = vunpack.c.h.b16 %v444
    %v521 = vunpack.c.l.b16 %v445
    %v522 = vunpack.c.h.b16 %v445
    %v523 = vpack.c.b16 %v519, %v519
    %v524 = vpack.c.b16 %v520, %v520
    %v525 = vpack.c.b16 %v521, %v521
    %v526 = vpack.c.b16 %v522, %v522
    %v595 = vunpack.c.l.b16 %v446
    %v596 = vunpack.c.l.b16 %v447
    %v597 = vunpack.c.l.b16 %v448
    %v598 = vunpack.c.l.b16 %v449
    %v599 = vunpack.c.l.b16 %v450
    %v600 = vunpack.c.l.b16 %v451
    %v601 = vunpack.c.l.b16 %v452
    %v602 = vunpack.c.l.b16 %v453
    %v603 = vunpack.c.l.b16 %v454
    %v604 = vunpack.c.l.b16 %v455
    %v605 = vunpack.c.l.b16 %v456
    %v606 = vunpack.c.l.b16 %v457
    %v607 = vunpack.c.l.b16 %v458
    %v608 = vunpack.c.l.b16 %v459
    %v609 = vunpack.c.l.b16 %v460
    %v610 = vunpack.c.l.b16 %v461
    %v611 = vunpack.c.l.b16 %v462
    %v612 = vunpack.c.l.b16 %v463
    %v613 = vunpack.c.l.b16 %v464
    %v614 = vunpack.c.l.b16 %v465
    %v615 = vunpack.c.l.b16 %v466
    %v616 = vunpack.c.l.b16 %v467
    %v617 = vunpack.c.l.b16 %v468
    %v618 = vunpack.c.l.b16 %v469
    %v619 = vunpack.c.l.b16 %v470
    %v620 = vunpack.c.l.b16 %v471
    %v621 = vunpack.c.l.b16 %v472
    %v622 = vunpack.c.l.b16 %v473
    %v623 = vunpack.c.l.b16 %v474
    %v624 = vunpack.c.l.b16 %v475
    %v625 = vunpack.c.l.b16 %v476
    %v626 = vunpack.c.l.b16 %v477
    %v627 = vunpack.c.l.b16 %v478
    %v628 = vunpack.c.l.b16 %v479
    %v629 = vunpack.c.l.b16 %v480
    %v630 = vunpack.c.l.b16 %v481
    %v631 = vunpack.c.l.b16 %v482
    %v632 = vunpack.c.l.b16 %v483
    %v633 = vunpack.c.l.b16 %v484
    %v634 = vunpack.c.l.b16 %v485
    %v635 = vunpack.c.l.b16 %v486
    %v636 = vunpack.c.l.b16 %v487
    %v637 = vunpack.c.l.b16 %v488
    %v638 = vunpack.c.l.b16 %v489
    %v639 = vunpack.c.l.b16 %v490
    %v640 = vunpack.c.l.b16 %v491
    %v641 = vunpack.c.l.b16 %v492
    %v642 = vunpack.c.l.b16 %v493
    %v643 = vunpack.c.l.b16 %v494
    %v644 = vunpack.c.l.b16 %v495
    %v645 = vunpack.c.l.b16 %v496
    %v646 = vunpack.c.l.b16 %v497
    %v647 = vunpack.c.l.b16 %v498
    %v648 = vunpack.c.l.b16 %v499
    %v649 = vunpack.c.l.b16 %v500
    %v650 = vunpack.c.l.b16 %v501
    %v651 = vunpack.c.l.b16 %v502
    %v652 = vunpack.c.l.b16 %v503
    %v653 = vunpack.c.l.b16 %v504
    %v654 = vunpack.c.l.b16 %v505
    %v655 = vunpack.c.l.b16 %v506
    %v656 = vunpack.c.l.b16 %v507
    %v657 = vunpack.c.l.b16 %v508
    %v658 = vunpack.c.l.b16 %v509
    %v659 = vpack.c.b16 %v596, %v595
    %v660 = vpack.c.b16 %v598, %v597
    %v661 = vpack.c.b16 %v600, %v599
    %v662 = vpack.c.b16 %v602, %v601
    %v663 = vpack.c.b16 %v604, %v603
    %v664 = vpack.c.b16 %v606, %v605
    %v665 = vpack.c.b16 %v608, %v607
    %v666 = vpack.c.b16 %v610, %v609
    %v667 = vpack.c.b16 %v612, %v611
    %v668 = vpack.c.b16 %v614, %v613
    %v669 = vpack.c.b16 %v616, %v615
    %v670 = vpack.c.b16 %v618, %v617
    %v671 = vpack.c.b16 %v620, %v619
    %v672 = vpack.c.b16 %v622, %v621
    %v673 = vpack.c.b16 %v624, %v623
    %v674 = vpack.c.b16 %v626, %v625
    %v675 = vpack.c.b16 %v628, %v627
    %v676 = vpack.c.b16 %v630, %v629
    %v677 = vpack.c.b16 %v632, %v631
    %v678 = vpack.c.b16 %v634, %v633
    %v679 = vpack.c.b16 %v636, %v635
    %v680 = vpack.c.b16 %v638, %v637
    %v681 = vpack.c.b16 %v640, %v639
    %v682 = vpack.c.b16 %v642, %v641
    %v683 = vpack.c.b16 %v644, %v643
    %v684 = vpack.c.b16 %v646, %v645
    %v685 = vpack.c.b16 %v648, %v647
    %v686 = vpack.c.b16 %v650, %v649
    %v687 = vpack.c.b16 %v652, %v651
    %v688 = vpack.c.b16 %v654, %v653
    %v689 = vpack.c.b16 %v656, %v655
    %v690 = vpack.c.b16 %v658, %v657
    %723 = vmatprep.subr.bf16.mxu0 0
    %724 = vmatpush1.bf16.msra.mxu0 %v659
    %725 = vmatprep.subr.bf16.mxu0 0
    %726 = vmatpush1.bf16.msra.mxu0 %v660
    %727 = vmatprep.subr.bf16.mxu0 0
    %728 = vmatpush1.bf16.msra.mxu0 %v661
    %729 = vmatprep.subr.bf16.mxu0 0
    %730 = vmatpush1.bf16.msra.mxu0 %v662
    %731 = vmatprep.subr.bf16.mxu0 0
    %732 = vmatpush1.bf16.msra.mxu0 %v663
    %733 = vmatprep.subr.bf16.mxu0 0
    %734 = vmatpush1.bf16.msra.mxu0 %v664
    %735 = vmatprep.subr.bf16.mxu0 0
    %736 = vmatpush1.bf16.msra.mxu0 %v665
    %737 = vmatprep.subr.bf16.mxu0 0
    %738 = vmatpush1.bf16.msra.mxu0 %v666
    %739 = vmatprep.subr.bf16.mxu0 0
    %740 = vmatpush1.bf16.msra.mxu0 %v667
    %741 = vmatprep.subr.bf16.mxu0 0
    %742 = vmatpush1.bf16.msra.mxu0 %v668
    %743 = vmatprep.subr.bf16.mxu0 0
    %744 = vmatpush1.bf16.msra.mxu0 %v669
    %745 = vmatprep.subr.bf16.mxu0 0
    %746 = vmatpush1.bf16.msra.mxu0 %v670
    %747 = vmatprep.subr.bf16.mxu0 0
    %748 = vmatpush1.bf16.msra.mxu0 %v671
    %749 = vmatprep.subr.bf16.mxu0 0
    %750 = vmatpush1.bf16.msra.mxu0 %v672
    %751 = vmatprep.subr.bf16.mxu0 0
    %752 = vmatpush1.bf16.msra.mxu0 %v673
    %753 = vmatprep.subr.bf16.mxu0 0
    %754 = vmatpush1.bf16.msra.mxu0 %v674
    %755 = vmatprep.mubr.bf16.mxu0 %v524
    %756 = vmatmul.mubr.bf16.gmra.mrb[0].mxu0 %v523
    %v757 = vpop.f32.mrb[0].mxu0
    %v758 = vadd.f32 %v515, %v757
    %v759 = vpop.f32.mrb[0].mxu0
    %v760 = vpop.f32.mrb[0].mxu0
    %v761 = vpop.f32.mrb[0].mxu0
    %762 = vdwg.mxu0
    %763 = vmatprep.subr.bf16.mxu0 0
    %764 = vmatpush1.bf16.msra.mxu0 %v675
    %765 = vmatprep.subr.bf16.mxu0 0
    %766 = vmatpush1.bf16.msra.mxu0 %v676
    %767 = vmatprep.subr.bf16.mxu0 0
    %768 = vmatpush1.bf16.msra.mxu0 %v677
    %769 = vmatprep.subr.bf16.mxu0 0
    %770 = vmatpush1.bf16.msra.mxu0 %v678
    %771 = vmatprep.subr.bf16.mxu0 0
    %772 = vmatpush1.bf16.msra.mxu0 %v679
    %773 = vmatprep.subr.bf16.mxu0 0
    %774 = vmatpush1.bf16.msra.mxu0 %v680
    %775 = vmatprep.subr.bf16.mxu0 0
    %776 = vmatpush1.bf16.msra.mxu0 %v681
    %777 = vmatprep.subr.bf16.mxu0 0
    %778 = vmatpush1.bf16.msra.mxu0 %v682
    %779 = vmatprep.subr.bf16.mxu0 0
    %780 = vmatpush1.bf16.msra.mxu0 %v683
    %781 = vmatprep.subr.bf16.mxu0 0
    %782 = vmatpush1.bf16.msra.mxu0 %v684
    %783 = vmatprep.subr.bf16.mxu0 0
    %784 = vmatpush1.bf16.msra.mxu0 %v685
    %785 = vmatprep.subr.bf16.mxu0 0
    %786 = vmatpush1.bf16.msra.mxu0 %v686
    %787 = vmatprep.subr.bf16.mxu0 0
    %788 = vmatpush1.bf16.msra.mxu0 %v687
    %789 = vmatprep.subr.bf16.mxu0 0
    %790 = vmatpush1.bf16.msra.mxu0 %v688
    %791 = vmatprep.subr.bf16.mxu0 0
    %792 = vmatpush1.bf16.msra.mxu0 %v689
    %793 = vmatprep.subr.bf16.mxu0 0
    %794 = vmatpush1.bf16.msra.mxu0 %v690
    %795 = vmatprep.mubr.bf16.mxu0 %v526
    %796 = vmatmul.mubr.bf16.gmra.mrb[0].mxu0 %v525
    %v797 = vpop.f32.mrb[0].mxu0
    %v798 = vadd.f32 %v758, %v797
    %v799 = vpop.f32.mrb[0].mxu0
    %v800 = vpop.f32.mrb[0].mxu0
    %v801 = vpop.f32.mrb[0].mxu0
    %802 = vdwg.mxu0
    %vm803 = vcmask 785408
    %804 = vst.msk [vmem:[#allocation3] sm:$0xff] %vm803, %v798
    // Predicated region
    $region22: #{tpu_custom_call.1} parent=1 // pred_check
      _
    $region23: #{tpu_custom_call.1} parent=1 // pred_check_branch
      %806 = sbr.rel (0) target = $region25
    $region24: #{tpu_custom_call.1} parent=1 // pred_region
      %s808 = ssub.s32 128, 128
      %809 = vsyncadd [#allocation4], %s808
      %s811 = sshll.u32 [#allocation3], 4
      %s812 = int_to_ptr.vmem [resolvable:$true] %s811
      %814 = dma.vmem_to_hbm [thread:$0]  %s812, 128, %s5, [#allocation4]
    $region25: #{tpu_custom_call.1} parent=1 // pred_fallthru
      _
    // Predicated region
    $region26: #{tpu_custom_call.1} parent=1 // pred_check
      _
    $region27: #{tpu_custom_call.1} parent=1 // pred_check_branch
      %816 = sbr.rel (0) target = $region29
    $region28: #{tpu_custom_call.1} parent=1 // pred_region
      %817 = dma.done [#allocation4], 128
    $region29: #{tpu_custom_call.1} parent=1 // pred_fallthru
      _
    %818 = vsyncpa [#allocation4], 1

</llo_original>
